<compile_context>
chip_gen: v6e
topology: v6e:2x2x1
jax: 0.10.0
libtpu: 0.0.40
codegen_flags: <defaults>
</compile_context>

<pallas_src>
import math
from functools import partial

import numpy as np
import jax
import jax.numpy as jnp
from jax import lax
from jax.experimental import pallas as pl
from jax.experimental.pallas import tpu as pltpu


# ---------------------------------------------------------------------------
# In-kernel helpers
# ---------------------------------------------------------------------------
def _atan_f32(x):
    """Float32 arctan (Cephes atanf-style, ~2 ulp).

    # TODO(synk): lax.atan has no reliable Mosaic lowering; this polynomial
    # reproduces arctan to f32 precision using only supported VPU ops.
    """
    sign = jnp.where(x < 0.0, jnp.float32(-1.0), jnp.float32(1.0))
    t = jnp.abs(x)
    t_safe = jnp.maximum(t, jnp.float32(1e-30))

    big = t > jnp.float32(2.414213562373095)     # tan(3*pi/8)
    mid = t > jnp.float32(0.4142135623730951)    # tan(pi/8)

    y0 = jnp.where(big, jnp.float32(math.pi / 2.0),
                   jnp.where(mid, jnp.float32(math.pi / 4.0), jnp.float32(0.0)))
    xr = jnp.where(big, -1.0 / t_safe,
                   jnp.where(mid, (t - 1.0) / (t + 1.0), t))
    z = xr * xr
    p = (((8.05374449538e-2 * z - 1.38776856032e-1) * z
          + 1.99777106478e-1) * z - 3.33329491539e-1)
    return sign * (y0 + p * z * xr + xr)


def _ciou_loss_rows(sm_ref):
    """Per-anchor (1 - CIoU) * weight, masked.  Returns (R, 128) f32."""
    eps = jnp.float32(1e-7)
    b1_x1, b1_y1, b1_x2, b1_y2 = sm_ref[0], sm_ref[1], sm_ref[2], sm_ref[3]
    b2_x1, b2_y1, b2_x2, b2_y2 = sm_ref[4], sm_ref[5], sm_ref[6], sm_ref[7]
    w = sm_ref[8]

    w1 = b1_x2 - b1_x1
    h1 = b1_y2 - b1_y1 + eps
    w2 = b2_x2 - b2_x1
    h2 = b2_y2 - b2_y1 + eps

    inter = (jnp.maximum(jnp.minimum(b1_x2, b2_x2) - jnp.maximum(b1_x1, b2_x1), 0.0) *
             jnp.maximum(jnp.minimum(b1_y2, b2_y2) - jnp.maximum(b1_y1, b2_y1), 0.0))
    union = w1 * h1 + w2 * h2 - inter + eps
    iou = inter / union

    cw = jnp.maximum(b1_x2, b2_x2) - jnp.minimum(b1_x1, b2_x1)
    ch = jnp.maximum(b1_y2, b2_y2) - jnp.minimum(b1_y1, b2_y1)
    c2 = cw * cw + ch * ch + eps
    dx = b2_x1 + b2_x2 - b1_x1 - b1_x2
    dy = b2_y1 + b2_y2 - b1_y1 - b1_y2
    rho2 = (dx * dx + dy * dy) * jnp.float32(0.25)
    d_atan = _atan_f32(w2 / h2) - _atan_f32(w1 / h1)
    v = jnp.float32(4.0 / (math.pi ** 2)) * d_atan * d_atan
    alpha = v / (v - iou + (1.0 + eps))
    ciou = iou - (rho2 / c2 + v * alpha)
    return jnp.where(w > 0.0, (1.0 - ciou) * w, 0.0)


def _dfl_loss_rows(sm_ref, pd_ref, reg_max):
    """Per-anchor DFL loss * weight, masked.  Returns (R, 128) f32."""
    r1 = reg_max + 1
    w = sm_ref[8]
    b2_x1, b2_y1, b2_x2, b2_y2 = sm_ref[4], sm_ref[5], sm_ref[6], sm_ref[7]
    ax, ay = sm_ref[9], sm_ref[10]
    sides = (ax - b2_x1, ay - b2_y1, b2_x2 - ax, b2_y2 - ay)   # ltrb (bbox2dist)

    dfl = jnp.zeros_like(w)
    for s in range(4):
        tgt = jnp.clip(sides[s], 0.0, reg_max - 0.01)
        tl = tgt.astype(jnp.int32)
        wl = (tl.astype(jnp.float32) + 1.0) - tgt
        wr = 1.0 - wl
        # pass 1: running max over the r1 class planes (pure VPU max of (R,128))
        mx = pd_ref[s * r1]
        for c in range(1, r1):
            mx = jnp.maximum(mx, pd_ref[s * r1 + c])
        # pass 2: sum(exp) + gather logits at tl / tl+1
        se = jnp.zeros_like(w)
        g_l = jnp.zeros_like(w)
        g_r = jnp.zeros_like(w)
        for c in range(r1):
            lc = pd_ref[s * r1 + c]
            se = se + jnp.exp(lc - mx)
            g_l = g_l + jnp.where(tl == c, lc, 0.0)
            g_r = g_r + jnp.where(tl + 1 == c, lc, 0.0)
        lse = mx + jnp.log(se)
        # CE(tl)*wl + CE(tl+1)*wr = lse*(wl+wr) - (g_l*wl + g_r*wr), wl+wr == 1
        dfl = dfl + lse - (g_l * wl + g_r * wr)
    dfl = dfl * jnp.float32(0.25)                 # mean over 4 sides
    return jnp.where(w > 0.0, dfl * w, 0.0)


def _reduce_to_1x1(acc):
    s = jnp.sum(acc, axis=0, keepdims=True)       # (1, 128)
    return jnp.sum(s, axis=1, keepdims=True)      # (1, 1)


# ---------------------------------------------------------------------------
# Kernels
# ---------------------------------------------------------------------------
def _iou_kernel(sm_ref, iou_out, iou_acc):
    i = pl.program_id(1)

    @pl.when(i == 0)
    def _init():
        iou_acc[...] = jnp.zeros_like(iou_acc)

    iou_acc[...] += _ciou_loss_rows(sm_ref)

    @pl.when(i == pl.num_programs(1) - 1)
    def _fini():
        iou_out[0] = _reduce_to_1x1(iou_acc[...])


def _iou_dfl_kernel(sm_ref, pd_ref, iou_out, dfl_out, iou_acc, dfl_acc, *, reg_max):
    i = pl.program_id(1)

    @pl.when(i == 0)
    def _init():
        iou_acc[...] = jnp.zeros_like(iou_acc)
        dfl_acc[...] = jnp.zeros_like(dfl_acc)

    iou_acc[...] += _ciou_loss_rows(sm_ref)
    dfl_acc[...] += _dfl_loss_rows(sm_ref, pd_ref, reg_max)

    @pl.when(i == pl.num_programs(1) - 1)
    def _fini():
        iou_out[0] = _reduce_to_1x1(iou_acc[...])
        dfl_out[0] = _reduce_to_1x1(dfl_acc[...])


# ---------------------------------------------------------------------------
# Wrapper ( = BboxLoss.forward )
# ---------------------------------------------------------------------------
class BboxLossPallas:
    """BboxLoss has no learnable parameters; reg_max/use_dfl are config."""

    def __init__(self, reg_max=16, use_dfl=False, rows_per_tile=None, core_split=2):
        self.reg_max = reg_max
        self.use_dfl = use_dfl
        # One grid step covers rows_per_tile * 128 anchors.
        self.rows_per_tile = (rows_per_tile if rows_per_tile is not None
                              else (32 if use_dfl else 128))
        self.core_split = core_split

    def __call__(self, pred_dist, pred_bboxes, anchor_points, target_bboxes,
                 target_scores, target_scores_sum, fg_mask):
        reg_max, use_dfl = self.reg_max, self.use_dfl
        B, N, _ = pred_bboxes.shape
        M = B * N

        # --- tiling geometry: anchors laid out as (rows, 128) lane-dense planes
        rows = -(-M // 128)                          # ceil(M / 128)
        csplit = max(1, int(self.core_split))
        rpc = -(-rows // csplit)                     # rows per chunk (unpadded)
        R = min(self.rows_per_tile, ((rpc + 7) // 8) * 8)
        R = max(8, ((R + 7) // 8) * 8)               # sublane-aligned tile height
        rpc = ((rpc + R - 1) // R) * R               # rows per chunk, multiple of R
        rowsP = rpc * csplit
        T = rpc // R                                 # tiles per chunk
        Mp = rowsP * 128

        def to_planes(x_mf):                         # (M, F) -> (F, rowsP, 128)
            F = x_mf.shape[1]
            x = jnp.transpose(x_mf.astype(jnp.float32))      # (F, M)
            x = jnp.pad(x, ((0, 0), (0, Mp - M)))
            return x.reshape(F, rowsP, 128)

        # Packed small stream: pred box (4) | target box (4) | weight (1) [| anchor (2)]
        # weight = sum over classes * fg_mask, computed on the host -> one row
        # instead of streaming all C class lanes + a separate mask stream.
        weight = (jnp.sum(target_scores.astype(jnp.float32), axis=-1) *
                  fg_mask.astype(jnp.float32)).reshape(M, 1)
        cols = [pred_bboxes.reshape(M, 4).astype(jnp.float32),
                target_bboxes.reshape(M, 4).astype(jnp.float32),
                weight]
        if use_dfl:
            ap = jnp.broadcast_to(anchor_points[None, :, :], (B, N, 2)).reshape(M, 2)
            cols.append(ap.astype(jnp.float32))
        small = to_planes(jnp.concatenate(cols, axis=-1))
        Fsm = small.shape[0]

        sm_spec = pl.BlockSpec((Fsm, R, 128), lambda c, i: (0, c * T + i, 0))
        out_spec = pl.BlockSpec((1, 1, 1), lambda c, i: (c, 0, 0))
        out_sds = jax.ShapeDtypeStruct((csplit, 1, 1), jnp.float32)
        cparams = pltpu.CompilerParams(
            dimension_semantics=("parallel", "arbitrary"))

        if use_dfl:
            D = 4 * (reg_max + 1)
            pd = to_planes(pred_dist.reshape(M, D))
            pd_spec = pl.BlockSpec((D, R, 128), lambda c, i: (0, c * T + i, 0))
            iou_sum, dfl_sum = pl.pallas_call(
                partial(_iou_dfl_kernel, reg_max=reg_max),
                out_shape=(out_sds, out_sds),
                grid_spec=pltpu.PrefetchScalarGridSpec(
                    num_scalar_prefetch=0,
                    grid=(csplit, T),
                    in_specs=[sm_spec, pd_spec],
                    out_specs=(out_spec, out_spec),
                    scratch_shapes=[pltpu.VMEM((R, 128), jnp.float32),
                                    pltpu.VMEM((R, 128), jnp.float32)]),
                compiler_params=cparams,
            )(small, pd)
        else:
            # pred_dist / anchor_points are never touched -> do not DMA them.
            iou_sum = pl.pallas_call(
                _iou_kernel,
                out_shape=out_sds,
                grid_spec=pltpu.PrefetchScalarGridSpec(
                    num_scalar_prefetch=0,
                    grid=(csplit, T),
                    in_specs=[sm_spec],
                    out_specs=out_spec,
                    scratch_shapes=[pltpu.VMEM((R, 128), jnp.float32)]),
                compiler_params=cparams,
            )(small)
            dfl_sum = None

        tss = jnp.asarray(target_scores_sum, jnp.float32)
        loss_iou = jnp.sum(iou_sum) / tss
        loss_dfl = jnp.sum(dfl_sum) / tss if use_dfl else jnp.float32(0.0)
        return loss_iou, loss_dfl


# ---------------------------------------------------------------------------
# Pure-numpy reference (mirrors the PyTorch forward exactly)
# ---------------------------------------------------------------------------
def _reference_np(pred_dist, pred_bboxes, anchor_points, target_bboxes,
                  target_scores, target_scores_sum, fg_mask, reg_max, use_dfl):
    pd = np.asarray(pred_dist, np.float32)
    pb = np.asarray(pred_bboxes, np.float32)
    ap = np.asarray(anchor_points, np.float32)
    tb = np.asarray(target_bboxes, np.float32)
    ts = np.asarray(target_scores, np.float32)
    m = np.asarray(fg_mask).astype(bool)
    tss = float(target_scores_sum)
    eps = 1e-7

    weight = ts.sum(-1)[m][:, None]
    b1, b2 = pb[m], tb[m]
    b1_x1, b1_y1, b1_x2, b1_y2 = [b1[:, i:i + 1] for i in range(4)]
    b2_x1, b2_y1, b2_x2, b2_y2 = [b2[:, i:i + 1] for i in range(4)]
    w1, h1 = b1_x2 - b1_x1, b1_y2 - b1_y1 + eps
    w2, h2 = b2_x2 - b2_x1, b2_y2 - b2_y1 + eps
    inter = (np.clip(np.minimum(b1_x2, b2_x2) - np.maximum(b1_x1, b2_x1), 0, None) *
             np.clip(np.minimum(b1_y2, b2_y2) - np.maximum(b1_y1, b2_y1), 0, None))
    union = w1 * h1 + w2 * h2 - inter + eps
    iou = inter / union
    cw = np.maximum(b1_x2, b2_x2) - np.minimum(b1_x1, b2_x1)
    ch = np.maximum(b1_y2, b2_y2) - np.minimum(b1_y1, b2_y1)
    c2 = cw ** 2 + ch ** 2 + eps
    rho2 = ((b2_x1 + b2_x2 - b1_x1 - b1_x2) ** 2 +
            (b2_y1 + b2_y2 - b1_y1 - b1_y2) ** 2) / 4.0
    v = 4.0 / math.pi ** 2 * (np.arctan(w2 / h2) - np.arctan(w1 / h1)) ** 2
    alpha = v / (v - iou + (1.0 + eps))
    ciou = iou - (rho2 / c2 + v * alpha)
    loss_iou = float(((1.0 - ciou) * weight).sum() / tss)

    if not use_dfl:
        return loss_iou, 0.0

    apb = np.broadcast_to(ap[None], tb[..., :2].shape)
    ltrb = np.concatenate([apb - tb[..., :2], tb[..., 2:] - apb], -1)
    ltrb = np.clip(ltrb, 0.0, reg_max - 0.01)
    t = ltrb[m]                                   # (nf, 4)
    logits = pd[m].reshape(-1, reg_max + 1)       # (nf*4, reg_max+1)
    tl = t.astype(np.int64)
    tr = tl + 1
    wl = tr - t
    wr = 1.0 - wl
    mx = logits.max(-1, keepdims=True)
    lsm = logits - (mx + np.log(np.exp(logits - mx).sum(-1, keepdims=True)))
    rows = np.arange(logits.shape[0])
    ce_l = -lsm[rows, tl.reshape(-1)].reshape(tl.shape)
    ce_r = -lsm[rows, tr.reshape(-1)].reshape(tl.shape)
    dfl = (ce_l * wl + ce_r * wr).mean(-1, keepdims=True)
    loss_dfl = float((dfl * weight).sum() / tss)
    return loss_iou, loss_dfl


# ---------------------------------------------------------------------------
if __name__ == "__main__":
    key = jax.random.PRNGKey(0)
    B, N, C, REG_MAX = 2, 96, 8, 16
    ks = jax.random.split(key, 6)

    def make_boxes(k):
        c = jax.random.uniform(k, (B, N, 2), minval=2.0, maxval=14.0)
        wh = jax.random.uniform(jax.random.fold_in(k, 1), (B, N, 2),
                                minval=0.5, maxval=4.0)
        return jnp.concatenate([c - wh / 2, c + wh / 2], axis=-1).astype(jnp.float32)

    pred_bboxes = make_boxes(ks[0])
    target_bboxes = make_boxes(ks[1])
    anchor_points = jax.random.uniform(ks[2], (N, 2), minval=0.0,
                                       maxval=16.0).astype(jnp.float32)
    pred_dist = jax.random.normal(ks[3], (B, N, 4 * (REG_MAX + 1)),
                                  dtype=jnp.float32)
    target_scores = jax.random.uniform(ks[4], (B, N, C), dtype=jnp.float32)
    fg_mask = jax.random.bernoulli(ks[5], 0.5, (B, N))
    target_scores_sum = jnp.maximum(target_scores.sum(), 1.0)

    for use_dfl in (False, True):   # default module config is use_dfl=False
        mod = BboxLossPallas(reg_max=REG_MAX, use_dfl=use_dfl)
        loss_iou, loss_dfl = mod(pred_dist, pred_bboxes, anchor_points,
                                 target_bboxes, target_scores,
                                 target_scores_sum, fg_mask)
        jax.block_until_ready((loss_iou, loss_dfl))
        ref_iou, ref_dfl = _reference_np(pred_dist, pred_bboxes, anchor_points,
                                         target_bboxes, target_scores,
                                         target_scores_sum, fg_mask,
                                         REG_MAX, use_dfl)
        np.testing.assert_allclose(float(loss_iou), ref_iou, rtol=1e-3, atol=1e-4)
        np.testing.assert_allclose(float(loss_dfl), ref_dfl, rtol=1e-3, atol=1e-4)

    print("KERNEL_OK")
</pallas_src>

<mosaic_0001>
module attributes {stable_mosaic.version = 11 : i64} {
  func.func @_iou_kernel(%arg0: i32, %arg1: i32, %arg2: memref<9x8x128xf32, #tpu.memory_space<vmem>>, %arg3: memref<1x1x1xf32, #tpu.memory_space<vmem>>, %arg4: memref<8x128xf32, #tpu.memory_space<vmem>>) attributes {dimension_semantics = [#tpu.dimension_semantics<parallel>, #tpu.dimension_semantics<arbitrary>], iteration_bounds = array<i64: 2, 1>, scalar_prefetch = 0 : i64, scratch_operands = 1 : i64, tpu.core_type = #tpu.core_type<tc>, window_params = [{transform_indices = @transform_0, window_bounds = array<i64: 9, 8, 128>}, {transform_indices = @transform_1, window_bounds = array<i64: 1, 1, 1>}]} {
    %c0_i32 = arith.constant 0 : i32
    %0 = arith.cmpi eq, %arg1, %c0_i32 : i32
    %1 = arith.extui %0 : i1 to i32
    %c0_i32_0 = arith.constant 0 : i32
    %2 = arith.cmpi ne, %1, %c0_i32_0 : i32
    scf.if %2 {
      %cst_69 = arith.constant 0.000000e+00 : f32
      %181 = vector.broadcast %cst_69 : f32 to vector<8x128xf32>
      %c0_70 = arith.constant 0 : index
      %c0_71 = arith.constant 0 : index
      %182 = vector.load %arg4[%c0_70, %c0_71] : memref<8x128xf32, #tpu.memory_space<vmem>>, vector<8x128xf32>
      tpu.vector_store %arg4[%c0_70, %c0_71], %181 {strides = array<i32>} : memref<8x128xf32, #tpu.memory_space<vmem>>, vector<8x128xf32>,
    } else {
    }
    %c0 = arith.constant 0 : index
    %c0_1 = arith.constant 0 : index
    %3 = vector.load %arg4[%c0, %c0_1] : memref<8x128xf32, #tpu.memory_space<vmem>>, vector<8x128xf32>
    %c0_2 = arith.constant 0 : index
    %c0_3 = arith.constant 0 : index
    %c0_4 = arith.constant 0 : index
    %4 = vector.load %arg2[%c0_2, %c0_3, %c0_4] : memref<9x8x128xf32, #tpu.memory_space<vmem>>, vector<1x8x128xf32>
    %5 = vector.shape_cast %4 : vector<1x8x128xf32> to vector<8x128xf32>
    %c1 = arith.constant 1 : index
    %c0_5 = arith.constant 0 : index
    %c0_6 = arith.constant 0 : index
    %6 = vector.load %arg2[%c1, %c0_5, %c0_6] : memref<9x8x128xf32, #tpu.memory_space<vmem>>, vector<1x8x128xf32>
    %7 = vector.shape_cast %6 : vector<1x8x128xf32> to vector<8x128xf32>
    %c2 = arith.constant 2 : index
    %c0_7 = arith.constant 0 : index
    %c0_8 = arith.constant 0 : index
    %8 = vector.load %arg2[%c2, %c0_7, %c0_8] : memref<9x8x128xf32, #tpu.memory_space<vmem>>, vector<1x8x128xf32>
    %9 = vector.shape_cast %8 : vector<1x8x128xf32> to vector<8x128xf32>
    %c3 = arith.constant 3 : index
    %c0_9 = arith.constant 0 : index
    %c0_10 = arith.constant 0 : index
    %10 = vector.load %arg2[%c3, %c0_9, %c0_10] : memref<9x8x128xf32, #tpu.memory_space<vmem>>, vector<1x8x128xf32>
    %11 = vector.shape_cast %10 : vector<1x8x128xf32> to vector<8x128xf32>
    %c4 = arith.constant 4 : index
    %c0_11 = arith.constant 0 : index
    %c0_12 = arith.constant 0 : index
    %12 = vector.load %arg2[%c4, %c0_11, %c0_12] : memref<9x8x128xf32, #tpu.memory_space<vmem>>, vector<1x8x128xf32>
    %13 = vector.shape_cast %12 : vector<1x8x128xf32> to vector<8x128xf32>
    %c5 = arith.constant 5 : index
    %c0_13 = arith.constant 0 : index
    %c0_14 = arith.constant 0 : index
    %14 = vector.load %arg2[%c5, %c0_13, %c0_14] : memref<9x8x128xf32, #tpu.memory_space<vmem>>, vector<1x8x128xf32>
    %15 = vector.shape_cast %14 : vector<1x8x128xf32> to vector<8x128xf32>
    %c6 = arith.constant 6 : index
    %c0_15 = arith.constant 0 : index
    %c0_16 = arith.constant 0 : index
    %16 = vector.load %arg2[%c6, %c0_15, %c0_16] : memref<9x8x128xf32, #tpu.memory_space<vmem>>, vector<1x8x128xf32>
    %17 = vector.shape_cast %16 : vector<1x8x128xf32> to vector<8x128xf32>
    %c7 = arith.constant 7 : index
    %c0_17 = arith.constant 0 : index
    %c0_18 = arith.constant 0 : index
    %18 = vector.load %arg2[%c7, %c0_17, %c0_18] : memref<9x8x128xf32, #tpu.memory_space<vmem>>, vector<1x8x128xf32>
    %19 = vector.shape_cast %18 : vector<1x8x128xf32> to vector<8x128xf32>
    %c8 = arith.constant 8 : index
    %c0_19 = arith.constant 0 : index
    %c0_20 = arith.constant 0 : index
    %20 = vector.load %arg2[%c8, %c0_19, %c0_20] : memref<9x8x128xf32, #tpu.memory_space<vmem>>, vector<1x8x128xf32>
    %21 = vector.shape_cast %20 : vector<1x8x128xf32> to vector<8x128xf32>
    %22 = arith.subf %9, %5 : vector<8x128xf32>
    %23 = arith.subf %11, %7 : vector<8x128xf32>
    %cst = arith.constant 1.000000e-07 : f32
    %24 = vector.broadcast %cst : f32 to vector<8x128xf32>
    %25 = arith.addf %23, %24 : vector<8x128xf32>
    %26 = arith.subf %17, %13 : vector<8x128xf32>
    %27 = arith.subf %19, %15 : vector<8x128xf32>
    %cst_21 = arith.constant 1.000000e-07 : f32
    %28 = vector.broadcast %cst_21 : f32 to vector<8x128xf32>
    %29 = arith.addf %27, %28 : vector<8x128xf32>
    %30 = arith.minimumf %9, %17 : vector<8x128xf32>
    %31 = arith.maximumf %5, %13 : vector<8x128xf32>
    %32 = arith.subf %30, %31 : vector<8x128xf32>
    %cst_22 = arith.constant 0.000000e+00 : f32
    %33 = vector.broadcast %cst_22 : f32 to vector<8x128xf32>
    %34 = arith.maximumf %32, %33 : vector<8x128xf32>
    %35 = arith.minimumf %11, %19 : vector<8x128xf32>
    %36 = arith.maximumf %7, %15 : vector<8x128xf32>
    %37 = arith.subf %35, %36 : vector<8x128xf32>
    %cst_23 = arith.constant 0.000000e+00 : f32
    %38 = vector.broadcast %cst_23 : f32 to vector<8x128xf32>
    %39 = arith.maximumf %37, %38 : vector<8x128xf32>
    %40 = arith.mulf %34, %39 : vector<8x128xf32>
    %41 = arith.mulf %22, %25 : vector<8x128xf32>
    %42 = arith.mulf %26, %29 : vector<8x128xf32>
    %43 = arith.addf %41, %42 : vector<8x128xf32>
    %44 = arith.subf %43, %40 : vector<8x128xf32>
    %cst_24 = arith.constant 1.000000e-07 : f32
    %45 = vector.broadcast %cst_24 : f32 to vector<8x128xf32>
    %46 = arith.addf %44, %45 : vector<8x128xf32>
    %47 = arith.divf %40, %46 : vector<8x128xf32>
    %48 = arith.maximumf %9, %17 : vector<8x128xf32>
    %49 = arith.minimumf %5, %13 : vector<8x128xf32>
    %50 = arith.subf %48, %49 : vector<8x128xf32>
    %51 = arith.maximumf %11, %19 : vector<8x128xf32>
    %52 = arith.minimumf %7, %15 : vector<8x128xf32>
    %53 = arith.subf %51, %52 : vector<8x128xf32>
    %54 = arith.mulf %50, %50 : vector<8x128xf32>
    %55 = arith.mulf %53, %53 : vector<8x128xf32>
    %56 = arith.addf %54, %55 : vector<8x128xf32>
    %cst_25 = arith.constant 1.000000e-07 : f32
    %57 = vector.broadcast %cst_25 : f32 to vector<8x128xf32>
    %58 = arith.addf %56, %57 : vector<8x128xf32>
    %59 = arith.addf %13, %17 : vector<8x128xf32>
    %60 = arith.subf %59, %5 : vector<8x128xf32>
    %61 = arith.subf %60, %9 : vector<8x128xf32>
    %62 = arith.addf %15, %19 : vector<8x128xf32>
    %63 = arith.subf %62, %7 : vector<8x128xf32>
    %64 = arith.subf %63, %11 : vector<8x128xf32>
    %65 = arith.mulf %61, %61 : vector<8x128xf32>
    %66 = arith.mulf %64, %64 : vector<8x128xf32>
    %67 = arith.addf %65, %66 : vector<8x128xf32>
    %cst_26 = arith.constant 2.500000e-01 : f32
    %68 = vector.broadcast %cst_26 : f32 to vector<8x128xf32>
    %69 = arith.mulf %67, %68 : vector<8x128xf32>
    %70 = arith.divf %26, %29 : vector<8x128xf32>
    %cst_27 = arith.constant 0.000000e+00 : f32
    %71 = vector.broadcast %cst_27 : f32 to vector<8x128xf32>
    %72 = arith.cmpf olt, %70, %71 : vector<8x128xf32>
    %cst_28 = arith.constant -1.000000e+00 : f32
    %cst_29 = arith.constant 1.000000e+00 : f32
    %73 = vector.broadcast %cst_28 : f32 to vector<8x128xf32>
    %74 = vector.broadcast %cst_29 : f32 to vector<8x128xf32>
    %75 = arith.select %72, %73, %74 : vector<8x128xi1>, vector<8x128xf32>
    %76 = math.absf %70 : vector<8x128xf32>
    %cst_30 = arith.constant 1.000000e-30 : f32
    %77 = vector.broadcast %cst_30 : f32 to vector<8x128xf32>
    %78 = arith.maximumf %76, %77 : vector<8x128xf32>
    %cst_31 = arith.constant 2.41421366 : f32
    %79 = vector.broadcast %cst_31 : f32 to vector<8x128xf32>
    %80 = arith.cmpf ogt, %76, %79 : vector<8x128xf32>
    %cst_32 = arith.constant 0.414213568 : f32
    %81 = vector.broadcast %cst_32 : f32 to vector<8x128xf32>
    %82 = arith.cmpf ogt, %76, %81 : vector<8x128xf32>
    %cst_33 = arith.constant 0.785398185 : f32
    %cst_34 = arith.constant 0.000000e+00 : f32
    %83 = vector.broadcast %cst_33 : f32 to vector<8x128xf32>
    %84 = vector.broadcast %cst_34 : f32 to vector<8x128xf32>
    %85 = arith.select %82, %83, %84 : vector<8x128xi1>, vector<8x128xf32>
    %cst_35 = arith.constant 1.57079637 : f32
    %86 = vector.broadcast %cst_35 : f32 to vector<8x128xf32>
    %87 = arith.select %80, %86, %85 : vector<8x128xi1>, vector<8x128xf32>
    %cst_36 = arith.constant -1.000000e+00 : f32
    %88 = vector.broadcast %cst_36 : f32 to vector<8x128xf32>
    %89 = arith.divf %88, %78 : vector<8x128xf32>
    %cst_37 = arith.constant 1.000000e+00 : f32
    %90 = vector.broadcast %cst_37 : f32 to vector<8x128xf32>
    %91 = arith.subf %76, %90 : vector<8x128xf32>
    %cst_38 = arith.constant 1.000000e+00 : f32
    %92 = vector.broadcast %cst_38 : f32 to vector<8x128xf32>
    %93 = arith.addf %76, %92 : vector<8x128xf32>
    %94 = arith.divf %91, %93 : vector<8x128xf32>
    %95 = arith.select %82, %94, %76 : vector<8x128xi1>, vector<8x128xf32>
    %96 = arith.select %80, %89, %95 : vector<8x128xi1>, vector<8x128xf32>
    %97 = arith.mulf %96, %96 : vector<8x128xf32>
    %cst_39 = arith.constant 0.0805374458 : f32
    %98 = vector.broadcast %cst_39 : f32 to vector<8x128xf32>
    %99 = arith.mulf %98, %97 : vector<8x128xf32>
    %cst_40 = arith.constant 0.138776854 : f32
    %100 = vector.broadcast %cst_40 : f32 to vector<8x128xf32>
    %101 = arith.subf %99, %100 : vector<8x128xf32>
    %102 = arith.mulf %101, %97 : vector<8x128xf32>
    %cst_41 = arith.constant 0.199777111 : f32
    %103 = vector.broadcast %cst_41 : f32 to vector<8x128xf32>
    %104 = arith.addf %102, %103 : vector<8x128xf32>
    %105 = arith.mulf %104, %97 : vector<8x128xf32>
    %cst_42 = arith.constant 0.333329499 : f32
    %106 = vector.broadcast %cst_42 : f32 to vector<8x128xf32>
    %107 = arith.subf %105, %106 : vector<8x128xf32>
    %108 = arith.mulf %107, %97 : vector<8x128xf32>
    %109 = arith.mulf %108, %96 : vector<8x128xf32>
    %110 = arith.addf %87, %109 : vector<8x128xf32>
    %111 = arith.addf %110, %96 : vector<8x128xf32>
    %112 = arith.mulf %75, %111 : vector<8x128xf32>
    %113 = arith.divf %22, %25 : vector<8x128xf32>
    %cst_43 = arith.constant 0.000000e+00 : f32
    %114 = vector.broadcast %cst_43 : f32 to vector<8x128xf32>
    %115 = arith.cmpf olt, %113, %114 : vector<8x128xf32>
    %cst_44 = arith.constant -1.000000e+00 : f32
    %cst_45 = arith.constant 1.000000e+00 : f32
    %116 = vector.broadcast %cst_44 : f32 to vector<8x128xf32>
    %117 = vector.broadcast %cst_45 : f32 to vector<8x128xf32>
    %118 = arith.select %115, %116, %117 : vector<8x128xi1>, vector<8x128xf32>
    %119 = math.absf %113 : vector<8x128xf32>
    %cst_46 = arith.constant 1.000000e-30 : f32
    %120 = vector.broadcast %cst_46 : f32 to vector<8x128xf32>
    %121 = arith.maximumf %119, %120 : vector<8x128xf32>
    %cst_47 = arith.constant 2.41421366 : f32
    %122 = vector.broadcast %cst_47 : f32 to vector<8x128xf32>
    %123 = arith.cmpf ogt, %119, %122 : vector<8x128xf32>
    %cst_48 = arith.constant 0.414213568 : f32
    %124 = vector.broadcast %cst_48 : f32 to vector<8x128xf32>
    %125 = arith.cmpf ogt, %119, %124 : vector<8x128xf32>
    %cst_49 = arith.constant 0.785398185 : f32
    %cst_50 = arith.constant 0.000000e+00 : f32
    %126 = vector.broadcast %cst_49 : f32 to vector<8x128xf32>
    %127 = vector.broadcast %cst_50 : f32 to vector<8x128xf32>
    %128 = arith.select %125, %126, %127 : vector<8x128xi1>, vector<8x128xf32>
    %cst_51 = arith.constant 1.57079637 : f32
    %129 = vector.broadcast %cst_51 : f32 to vector<8x128xf32>
    %130 = arith.select %123, %129, %128 : vector<8x128xi1>, vector<8x128xf32>
    %cst_52 = arith.constant -1.000000e+00 : f32
    %131 = vector.broadcast %cst_52 : f32 to vector<8x128xf32>
    %132 = arith.divf %131, %121 : vector<8x128xf32>
    %cst_53 = arith.constant 1.000000e+00 : f32
    %133 = vector.broadcast %cst_53 : f32 to vector<8x128xf32>
    %134 = arith.subf %119, %133 : vector<8x128xf32>
    %cst_54 = arith.constant 1.000000e+00 : f32
    %135 = vector.broadcast %cst_54 : f32 to vector<8x128xf32>
    %136 = arith.addf %119, %135 : vector<8x128xf32>
    %137 = arith.divf %134, %136 : vector<8x128xf32>
    %138 = arith.select %125, %137, %119 : vector<8x128xi1>, vector<8x128xf32>
    %139 = arith.select %123, %132, %138 : vector<8x128xi1>, vector<8x128xf32>
    %140 = arith.mulf %139, %139 : vector<8x128xf32>
    %cst_55 = arith.constant 0.0805374458 : f32
    %141 = vector.broadcast %cst_55 : f32 to vector<8x128xf32>
    %142 = arith.mulf %141, %140 : vector<8x128xf32>
    %cst_56 = arith.constant 0.138776854 : f32
    %143 = vector.broadcast %cst_56 : f32 to vector<8x128xf32>
    %144 = arith.subf %142, %143 : vector<8x128xf32>
    %145 = arith.mulf %144, %140 : vector<8x128xf32>
    %cst_57 = arith.constant 0.199777111 : f32
    %146 = vector.broadcast %cst_57 : f32 to vector<8x128xf32>
    %147 = arith.addf %145, %146 : vector<8x128xf32>
    %148 = arith.mulf %147, %140 : vector<8x128xf32>
    %cst_58 = arith.constant 0.333329499 : f32
    %149 = vector.broadcast %cst_58 : f32 to vector<8x128xf32>
    %150 = arith.subf %148, %149 : vector<8x128xf32>
    %151 = arith.mulf %150, %140 : vector<8x128xf32>
    %152 = arith.mulf %151, %139 : vector<8x128xf32>
    %153 = arith.addf %130, %152 : vector<8x128xf32>
    %154 = arith.addf %153, %139 : vector<8x128xf32>
    %155 = arith.mulf %118, %154 : vector<8x128xf32>
    %156 = arith.subf %112, %155 : vector<8x128xf32>
    %cst_59 = arith.constant 0.405284733 : f32
    %157 = vector.broadcast %cst_59 : f32 to vector<8x128xf32>
    %158 = arith.mulf %157, %156 : vector<8x128xf32>
    %159 = arith.mulf %158, %156 : vector<8x128xf32>
    %160 = arith.subf %159, %47 : vector<8x128xf32>
    %cst_60 = arith.constant 1.000000e+00 : f32
    %cst_61 = arith.constant 1.000000e-07 : f32
    %161 = arith.addf %cst_60, %cst_61 : f32
    %162 = vector.broadcast %161 : f32 to vector<8x128xf32>
    %163 = arith.addf %160, %162 : vector<8x128xf32>
    %164 = arith.divf %159, %163 : vector<8x128xf32>
    %165 = arith.divf %69, %58 : vector<8x128xf32>
    %166 = arith.mulf %159, %164 : vector<8x128xf32>
    %167 = arith.addf %165, %166 : vector<8x128xf32>
    %168 = arith.subf %47, %167 : vector<8x128xf32>
    %cst_62 = arith.constant 0.000000e+00 : f32
    %169 = vector.broadcast %cst_62 : f32 to vector<8x128xf32>
    %170 = arith.cmpf ogt, %21, %169 : vector<8x128xf32>
    %cst_63 = arith.constant 1.000000e+00 : f32
    %171 = vector.broadcast %cst_63 : f32 to vector<8x128xf32>
    %172 = arith.subf %171, %168 : vector<8x128xf32>
    %173 = arith.mulf %172, %21 : vector<8x128xf32>
    %cst_64 = arith.constant 0.000000e+00 : f32
    %174 = vector.broadcast %cst_64 : f32 to vector<8x128xf32>
    %175 = arith.select %170, %173, %174 : vector<8x128xi1>, vector<8x128xf32>
    %176 = arith.addf %3, %175 : vector<8x128xf32>
    %c0_65 = arith.constant 0 : index
    %c0_66 = arith.constant 0 : index
    %177 = vector.load %arg4[%c0_65, %c0_66] : memref<8x128xf32, #tpu.memory_space<vmem>>, vector<8x128xf32>
    tpu.vector_store %arg4[%c0_65, %c0_66], %176 {strides = array<i32>} : memref<8x128xf32, #tpu.memory_space<vmem>>, vector<8x128xf32>,
    %c0_i32_67 = arith.constant 0 : i32
    %178 = arith.cmpi eq, %arg1, %c0_i32_67 : i32
    %179 = arith.extui %178 : i1 to i32
    %c0_i32_68 = arith.constant 0 : i32
    %180 = arith.cmpi ne, %179, %c0_i32_68 : i32
    scf.if %180 {
      %c0_69 = arith.constant 0 : index
      %c0_70 = arith.constant 0 : index
      %181 = vector.load %arg4[%c0_69, %c0_70] : memref<8x128xf32, #tpu.memory_space<vmem>>, vector<8x128xf32>
      %cst_71 = arith.constant dense<0.000000e+00> : vector<128xf32>
      %182 = vector.multi_reduction <add>, %181, %cst_71 [0] : vector<8x128xf32> to vector<128xf32>
      %183 = vector.shape_cast %182 : vector<128xf32> to vector<1x128xf32>
      %cst_72 = arith.constant dense<0.000000e+00> : vector<1xf32>
      %184 = vector.multi_reduction <add>, %183, %cst_72 [1] : vector<1x128xf32> to vector<1xf32>
      %185 = vector.shape_cast %184 : vector<1xf32> to vector<1x1xf32>
      %c0_73 = arith.constant 0 : index
      %c0_74 = arith.constant 0 : index
      %c0_75 = arith.constant 0 : index
      %186 = vector.load %arg3[%c0_73, %c0_74, %c0_75] : memref<1x1x1xf32, #tpu.memory_space<vmem>>, vector<1x1x1xf32>
      %187 = vector.shape_cast %186 : vector<1x1x1xf32> to vector<1x1xf32>
      %188 = vector.shape_cast %185 : vector<1x1xf32> to vector<1x1x1xf32>
      tpu.vector_store %arg3[%c0_73, %c0_74, %c0_75], %188 {strides = array<i32>} : memref<1x1x1xf32, #tpu.memory_space<vmem>>, vector<1x1x1xf32>,
    } else {
    }
    return
  }
  func.func @transform_0(%arg0: i32, %arg1: i32) -> (i32, i32, i32) {
    %c1_i32 = arith.constant 1 : i32
    %0 = arith.muli %arg0, %c1_i32 : i32
    %1 = arith.addi %0, %arg1 : i32
    %c0_i32 = arith.constant 0 : i32
    %c0_i32_0 = arith.constant 0 : i32
    %c0_i32_1 = arith.constant 0 : i32
    return %c0_i32, %1, %c0_i32_0 : i32, i32, i32
  }
  func.func @transform_1(%arg0: i32, %arg1: i32) -> (i32, i32, i32) {
    %c0_i32 = arith.constant 0 : i32
    %c0_i32_0 = arith.constant 0 : i32
    %c0_i32_1 = arith.constant 0 : i32
    return %arg0, %c0_i32, %c0_i32_0 : i32, i32, i32
  }
}

</mosaic_0001>

<llo_original>
// kernel: tpu_custom_call.1
$region0: #{tpu_custom_call.1}
  #allocation0 [shape = 'u32[]', space=smem, size = 0x4, offset = 0x4, fixed_abs, tag = 'smem constant byte address 0x4 - core index']
  #allocation1 [shape = 'u32[144,128]{1,0:T(1,128)}', space=vmem, size = 0x12000, scoped, tag = 'internal scratch']
  #allocation2 [shape = 'f32[8,128]{1,0:T(8,128)}', space=vmem, size = 0x1000, scoped, tag = 'scratch operand']
  %s0 = inlined_call_operand.hbm [shape: f32[9,16,128], index: 0, kind: input, shape index: {}]
  %s1 = inlined_call_operand.vmem [shape: f32[2,1,1], index: 1, kind: output, shape index: {}]
  %s2 = sld [smem:[#allocation0]]
  $region49: #{tpu_custom_call.1} parent=0
    _
  %s4 = ssub.s32 1, %s2
  %s5 = scalar_select 0, %s4, %s2
  $region1: #{tpu_custom_call.1} parent=0
    #allocation3 [shape = 'u8[73728]{0}', space=vmem, size = 0x12000, scoped, tag = 'input window, operand 0']
    #allocation4 [shape = 's32[2]{0}', space=sflag, size = 0x8, scoped, tag = 'scoped memory for tpu_custom_call.1']
    %6 = vsyncpa [#allocation4], 0
    %s7 = scalar_lea.sflag [#allocation4], 1
    %8 = vsyncpa %s7, 0
    loop: start=0, step=1, limit=4
    $region2: #{tpu_custom_call.1} parent=1 // loop_pre_header
      _
    $region3: #{tpu_custom_call.1} parent=1 // loop_header
      %s10 = sphi 0, %s14
      %p11 = scmp.ge.s32.totalorder %s10, 4
      %s17 = sphi 0, %s29
      %s18 = sphi 0, %s25
      %s19 = sphi 0, %s17
      %s20 = sphi 0, %s18
      %s21 = sphi 0, %s19
      %s22 = sphi 0, %s20
      %s34 = sphi 0, %s36
      %s37 = sphi 0, %s34
      %s38 = sphi 0, %s37
      %s54 = sphi 0, %s38
      %s60 = sphi 0, %s62
      %s63 = sphi 0, %s60
      %s64 = sphi 0, %s63
      %s80 = sphi 0, %s64
    $region4: #{tpu_custom_call.1} parent=1 // loop_header_branch
      %13 = sbr.rel (%p11) target = $region8
    $region5: #{tpu_custom_call.1} parent=1 // loop_body
      %s15 = ssub.s32 %s10, 1
      %s16 = ssub.s32 %s10, 2
      %s23 = sadd.s32 1, %s18
      %p24 = scmp.ge.s32.totalorder %s23, 1
      %s25 = scalar_select %p24, 0, %s23
      %s26 = sadd.s32 1, %s17
      %s27 = scalar_select %p24, %s26, %s17
      %p28 = scmp.ge.s32.totalorder %s27, 2
      %s29 = scalar_select %p28, 0, %s27
      %s30 = sadd.s32 %s17, %s18
      %s31 = sadd.s32 %s29, %s25
      %s32 = ssub.s32 %s30, %s31
      %p33 = scmp.eq.s32.totalorder %s32, 0
      %s35 = sadd.s32 %s34, 1
      %s36 = scalar_select %p33, %s34, %s35
      %p39 = pneg %p33
      %p40 = scmp.eq.s32.totalorder %s10, 1
      %p41 = por %p39, %p40
      %p42 = scmp.ne.s32.totalorder %s34, %s37
      %p43 = scmp.eq.s32.totalorder %s10, 0
      %p44 = por %p42, %p43
      %p45 = scmp.ne.s32.totalorder %s34, %s37
      %p46 = scmp.eq.s32.totalorder %s15, 1
      %p47 = por %p45, %p46
      %p48 = scmp.ne.s32.totalorder %s37, %s38
      %p49 = scmp.eq.s32.totalorder %s15, 0
      %p50 = por %p48, %p49
      %p51 = scmp.ne.s32.totalorder %s37, %s38
      %p52 = scmp.eq.s32.totalorder %s16, 1
      %p53 = por %p51, %p52
      %p55 = scmp.ne.s32.totalorder %s38, %s54
      %p56 = scmp.eq.s32.totalorder %s16, 0
      %p57 = por %p55, %p56
      %s58 = ssub.s32 %s17, %s29
      %p59 = scmp.eq.s32.totalorder %s58, 0
      %s61 = sadd.s32 %s60, 1
      %s62 = scalar_select %p59, %s60, %s61
      %p65 = pneg %p59
      %p66 = scmp.eq.s32.totalorder %s10, 1
      %p67 = por %p65, %p66
      %p68 = scmp.ne.s32.totalorder %s60, %s63
      %p69 = scmp.eq.s32.totalorder %s10, 0
      %p70 = por %p68, %p69
      %p71 = scmp.ne.s32.totalorder %s60, %s63
      %p72 = scmp.eq.s32.totalorder %s15, 1
      %p73 = por %p71, %p72
      %p74 = scmp.ne.s32.totalorder %s63, %s64
      %p75 = scmp.eq.s32.totalorder %s15, 0
      %p76 = por %p74, %p75
      %p77 = scmp.ne.s32.totalorder %s63, %s64
      %p78 = scmp.eq.s32.totalorder %s16, 1
      %p79 = por %p77, %p78
      %p81 = scmp.ne.s32.totalorder %s64, %s80
      %p82 = scmp.eq.s32.totalorder %s16, 0
      %p83 = por %p81, %p82
      %p84 = scmp.le.s32.totalorder 1, %s10
      %p85 = scmp.lt.s32.totalorder %s10, 3
      %p86 = pnand %p84, %p85
      %p87 = pneg %p86
      // Predicated region
      $region9: #{tpu_custom_call.1} parent=5 // pred_check
        _
      $region10: #{tpu_custom_call.1} parent=5 // pred_check_branch
        %89 = sbr.rel (%p86) target = $region12
      $region11: #{tpu_custom_call.1} parent=5 // pred_region
        %s90 = ssub.s32 %s10, 1
      $region12: #{tpu_custom_call.1} parent=5 // pred_fallthru
        _
      %p91 = scmp.lt.s32.totalorder %s10, 2
      // Predicated region
      $region13: #{tpu_custom_call.1} parent=5 // pred_check
        %p92 = pneg %p91
      $region14: #{tpu_custom_call.1} parent=5 // pred_check_branch
        %94 = sbr.rel (%p92) target = $region16
      $region15: #{tpu_custom_call.1} parent=5 // pred_region
        // Predicated region
        $region17: #{tpu_custom_call.1} parent=15 // pred_check
          %p95 = pneg %p44
        $region18: #{tpu_custom_call.1} parent=15 // pred_check_branch
          %97 = sbr.rel (%p95) target = $region20
        $region19: #{tpu_custom_call.1} parent=15 // pred_region
          %s98 = sand.u32 %s34, 1
          %s99 = scalar_lea.sflag [#allocation4], %s98
          %s100 = sand.u32 %s34, 1
          %s101 = smul.addr %s100, 72
          %s102 = scalar_lea.vmem [#allocation3], %s101
          %s103 = sadd.s32 %s17, %s18
          %s105 = ssub.s32 1152, 1152
          %106 = vsyncadd %s99, %s105
          %s107 = smul.addr %s103, 128
          %s108 = scalar_lea.hbm %s0, %s107
          %s109 = sshll.u32 %s102, 4
          %s110 = int_to_ptr.vmem [resolvable:$true] %s109
          %115 = dma.hbm_to_vmem [thread:$0]  %s108, 1152, %s110, %s99, 256, 128, 8
        $region20: #{tpu_custom_call.1} parent=15 // pred_fallthru
          _
      $region16: #{tpu_custom_call.1} parent=5 // pred_fallthru
        _
      %p116 = scmp.le.s32.totalorder 1, %s10
      %p117 = scmp.lt.s32.totalorder %s10, 3
      %p118 = pnand %p116, %p117
      %p119 = pneg %p118
      // Predicated region
      $region21: #{tpu_custom_call.1} parent=5 // pred_check
        _
      $region22: #{tpu_custom_call.1} parent=5 // pred_check_branch
        %121 = sbr.rel (%p118) target = $region24
      $region23: #{tpu_custom_call.1} parent=5 // pred_region
        %s122 = ssub.s32 %s10, 1
        %s123 = sand.u32 %s37, 1
        %s124 = scalar_lea.sflag [#allocation4], %s123
        %s125 = sand.u32 %s37, 1
        %s126 = smul.addr %s125, 72
        %s127 = scalar_lea.vmem [#allocation3], %s126
        // Predicated region
        $region25: #{tpu_custom_call.1} parent=23 // pred_check
          %p128 = pneg %p50
        $region26: #{tpu_custom_call.1} parent=23 // pred_check_branch
          %130 = sbr.rel (%p128) target = $region28
        $region27: #{tpu_custom_call.1} parent=23 // pred_region
          %131 = dma.done %s124, 1152
        $region28: #{tpu_custom_call.1} parent=23 // pred_fallthru
          _
        %s132 = sand.u32 %s37, 1
        %s133 = scalar_lea.sflag [#allocation4], %s132
        %s134 = sand.u32 %s37, 1
        %s135 = smul.addr %s134, 72
        %s136 = scalar_lea.vmem [#allocation3], %s135
        %p137 = pneg %p50
        %p138 = pneg %p47
        %p139 = pneg %p76
        %p140 = pneg %p73
        %p141 = scmp.lt.s32.totalorder %s19, 1
        %s142 = scalar_select %p141, %s19, 1
        %s143 = scalar_lea.vmem %s1, %s142
        %s144 = sadd.s32 %s19, %s20
        %p145 = scmp.lt.s32.totalorder %s19, 1
        %s146 = scalar_select %p145, %s19, 1
        %s147 = scalar_lea.vmem %s1, %s146
        %p148 = scmp.eq.s32.totalorder %s20, 0
        // Predicated region
        $region29: #{tpu_custom_call.1} parent=23 // pred_check
          %p149 = pneg %p148
        $region30: #{tpu_custom_call.1} parent=23 // pred_check_branch
          %151 = sbr.rel (%p149) target = $region32
        $region31: #{tpu_custom_call.1} parent=23 // pred_region
          %152 = vst [vmem:[#allocation2] sm:$0xff] 0.0
        $region32: #{tpu_custom_call.1} parent=23 // pred_fallthru
          _
        %v153 = vld [vmem:[#allocation2] sm:$0xff]
        %v154 = vld [vmem:[%s127] sm:$0xff]
        %s155 = scalar_lea.vmem %s127, 8 [#allocation3]
        %v156 = vld [vmem:[%s155] sm:$0xff]
        %s157 = scalar_lea.vmem %s127, 16 [#allocation3]
        %v158 = vld [vmem:[%s157] sm:$0xff]
        %s159 = scalar_lea.vmem %s127, 24 [#allocation3]
        %v160 = vld [vmem:[%s159] sm:$0xff]
        %s161 = scalar_lea.vmem %s127, 32 [#allocation3]
        %v162 = vld [vmem:[%s161] sm:$0xff]
        %s163 = scalar_lea.vmem %s127, 40 [#allocation3]
        %v164 = vld [vmem:[%s163] sm:$0xff]
        %s165 = scalar_lea.vmem %s127, 48 [#allocation3]
        %v166 = vld [vmem:[%s165] sm:$0xff]
        %s167 = scalar_lea.vmem %s127, 56 [#allocation3]
        %v168 = vld [vmem:[%s167] sm:$0xff]
        %s169 = scalar_lea.vmem %s127, 64 [#allocation3]
        %v170 = vld [vmem:[%s169] sm:$0xff]
        %v171 = vsub.f32 %v158, %v154
        %v172 = vsub.f32 %v160, %v156
        %v173 = vadd.f32 %v172, 1e-07
        %v174 = vsub.f32 %v166, %v162
        %v175 = vsub.f32 %v168, %v164
        %v176 = vadd.f32 %v175, 1e-07
        %v177 = vmin.f32 %v158, %v166
        %v178 = vmax.f32 %v154, %v162
        %v179 = vsub.f32 %v177, %v178
        %v180 = vmax.f32 %v179, 0.0
        %v181 = vmin.f32 %v160, %v168
        %v182 = vmax.f32 %v156, %v164
        %v183 = vsub.f32 %v181, %v182
        %v184 = vmax.f32 %v183, 0.0
        %v185 = vmul.f32 %v180, %v184
        %v186 = vmul.f32 %v171, %v173
        %v187 = vmul.f32 %v174, %v176
        %v188 = vadd.f32 %v186, %v187
        %v189 = vsub.f32 %v188, %v185
        %v190 = vadd.f32 %v189, 1e-07
        %v191 = vrcp.pop %v190
        %v192 = vmul.f32 %v185, %v191
        %v193 = vmax.f32 %v158, %v166
        %v194 = vmin.f32 %v154, %v162
        %v195 = vsub.f32 %v193, %v194
        %v196 = vmax.f32 %v160, %v168
        %v197 = vmin.f32 %v156, %v164
        %v198 = vsub.f32 %v196, %v197
        %v199 = vmul.f32 %v195, %v195
        %v200 = vmul.f32 %v198, %v198
        %v201 = vadd.f32 %v199, %v200
        %v202 = vadd.f32 %v201, 1e-07
        %v203 = vadd.f32 %v162, %v166
        %v204 = vsub.f32 %v203, %v154
        %v205 = vsub.f32 %v204, %v158
        %v206 = vadd.f32 %v164, %v168
        %v207 = vsub.f32 %v206, %v156
        %v208 = vsub.f32 %v207, %v160
        %v209 = vmul.f32 %v205, %v205
        %v210 = vmul.f32 %v208, %v208
        %v211 = vadd.f32 %v209, %v210
        %v212 = vmul.f32 %v211, 0.25
        %v213 = vrcp.pop %v176
        %v214 = vmul.f32 %v174, %v213
        %vm215 = vcmp.lt.f32.partialorder %v214, 0.0
        %v216 = vsel %vm215, -1.0, 1.0
        %v217 = vand.u32 2147483647, %v214
        %v218 = vmax.f32 %v217, 1e-30
        %vm219 = vcmp.gt.f32.partialorder %v217, 2.4142137
        %vm220 = vcmp.gt.f32.partialorder %v217, 0.41421357
        %v221 = vsel %vm220, 0.7853982, 0.0
        %v222 = vsel %vm219, 1.5707964, %v221
        %v223 = vrcp.pop %v218
        %v224 = vmul.f32 -1.0, %v223
        %v225 = vsub.f32 %v217, 1.0
        %v226 = vadd.f32 %v217, 1.0
        %v227 = vrcp.pop %v226
        %v228 = vmul.f32 %v225, %v227
        %v229 = vsel %vm220, %v228, %v217
        %v230 = vsel %vm219, %v224, %v229
        %v231 = vmul.f32 %v230, %v230
        %v232 = vmul.f32 %v231, 0.080537446
        %v233 = vsub.f32 %v232, 0.13877685
        %v234 = vmul.f32 %v233, %v231
        %v235 = vadd.f32 %v234, 0.19977711
        %v236 = vmul.f32 %v235, %v231
        %v237 = vsub.f32 %v236, 0.3333295
        %v238 = vmul.f32 %v237, %v231
        %v239 = vmul.f32 %v238, %v230
        %v240 = vadd.f32 %v222, %v239
        %v241 = vadd.f32 %v240, %v230
        %v242 = vmul.f32 %v216, %v241
        %v243 = vrcp.pop %v173
        %v244 = vmul.f32 %v171, %v243
        %vm245 = vcmp.lt.f32.partialorder %v244, 0.0
        %v246 = vsel %vm245, -1.0, 1.0
        %v247 = vand.u32 2147483647, %v244
        %v248 = vmax.f32 %v247, 1e-30
        %vm249 = vcmp.gt.f32.partialorder %v247, 2.4142137
        %vm250 = vcmp.gt.f32.partialorder %v247, 0.41421357
        %v251 = vsel %vm250, 0.7853982, 0.0
        %v252 = vsel %vm249, 1.5707964, %v251
        %v253 = vrcp.pop %v248
        %v254 = vmul.f32 -1.0, %v253
        %v255 = vsub.f32 %v247, 1.0
        %v256 = vadd.f32 %v247, 1.0
        %v257 = vrcp.pop %v256
        %v258 = vmul.f32 %v255, %v257
        %v259 = vsel %vm250, %v258, %v247
        %v260 = vsel %vm249, %v254, %v259
        %v261 = vmul.f32 %v260, %v260
        %v262 = vmul.f32 %v261, 0.080537446
        %v263 = vsub.f32 %v262, 0.13877685
        %v264 = vmul.f32 %v263, %v261
        %v265 = vadd.f32 %v264, 0.19977711
        %v266 = vmul.f32 %v265, %v261
        %v267 = vsub.f32 %v266, 0.3333295
        %v268 = vmul.f32 %v267, %v261
        %v269 = vmul.f32 %v268, %v260
        %v270 = vadd.f32 %v252, %v269
        %v271 = vadd.f32 %v270, %v260
        %v272 = vmul.f32 %v246, %v271
        %v273 = vsub.f32 %v242, %v272
        %v274 = vmul.f32 %v273, 0.40528473
        %v275 = vmul.f32 %v274, %v273
        %v276 = vsub.f32 %v275, %v192
        %v277 = vadd.f32 %v276, 1.0000001
        %v278 = vrcp.pop %v277
        %v279 = vmul.f32 %v275, %v278
        %v280 = vrcp.pop %v202
        %v281 = vmul.f32 %v212, %v280
        %v282 = vmul.f32 %v275, %v279
        %v283 = vadd.f32 %v281, %v282
        %v284 = vsub.f32 %v192, %v283
        %vm285 = vcmp.gt.f32.partialorder %v170, 0.0
        %v286 = vsub.f32 1.0, %v284
        %v287 = vmul.f32 %v286, %v170
        %v288 = vsel %vm285, %v287, 0.0
        %v289 = vadd.f32 %v153, %v288
        %290 = vst [vmem:[#allocation2] sm:$0xff] %v289
        // Predicated region
        $region33: #{tpu_custom_call.1} parent=23 // pred_check
          %p291 = pneg %p148
        $region34: #{tpu_custom_call.1} parent=23 // pred_check_branch
          %293 = sbr.rel (%p291) target = $region36
        $region35: #{tpu_custom_call.1} parent=23 // pred_region
          %v294 = vld [vmem:[#allocation2] sm:$0xff]
          %v295 = vrot.slane %v294, 4
          %v296 = vadd.f32 %v294, %v295
          %v297 = vrot.slane %v296, 2
          %v298 = vadd.f32 %v296, %v297
          %v299 = vrot.slane %v298, 1
          %v300 = vadd.f32 %v298, %v299
          %301 = vadd.xlane.f32.xlu0 %v300
          %v302 = vpop.xlane.xlu0 %301
          %vm303 = vcmask 0
          %304 = vst.msk [vmem:[%s147] sm:$0x1] %vm303, %v302
        $region36: #{tpu_custom_call.1} parent=23 // pred_fallthru
          _
        %p305 = scmp.lt.s32.totalorder %s19, 1
        %s306 = scalar_select %p305, %s19, 1
        %s307 = scalar_lea.vmem %s1, %s306
        // Predicated region
        $region37: #{tpu_custom_call.1} parent=23 // pred_check
          %p308 = pneg %p73
        $region38: #{tpu_custom_call.1} parent=23 // pred_check_branch
          %310 = sbr.rel (%p308) target = $region40
        $region39: #{tpu_custom_call.1} parent=23 // pred_region
          _
        $region40: #{tpu_custom_call.1} parent=23 // pred_fallthru
          _
      $region24: #{tpu_custom_call.1} parent=5 // pred_fallthru
        _
      %p311 = scmp.le.s32.totalorder 2, %s10
      // Predicated region
      $region41: #{tpu_custom_call.1} parent=5 // pred_check
        %p312 = pneg %p311
      $region42: #{tpu_custom_call.1} parent=5 // pred_check_branch
        %314 = sbr.rel (%p312) target = $region44
      $region43: #{tpu_custom_call.1} parent=5 // pred_region
        %s315 = ssub.s32 %s10, 2
        // Predicated region
        $region45: #{tpu_custom_call.1} parent=43 // pred_check
          %p316 = pneg %p79
        $region46: #{tpu_custom_call.1} parent=43 // pred_check_branch
          %318 = sbr.rel (%p316) target = $region48
        $region47: #{tpu_custom_call.1} parent=43 // pred_region
          %p319 = scmp.lt.s32.totalorder %s21, 1
          %s320 = scalar_select %p319, %s21, 1
          %s321 = scalar_lea.vmem %s1, %s320
        $region48: #{tpu_custom_call.1} parent=43 // pred_fallthru
          _
      $region44: #{tpu_custom_call.1} parent=5 // pred_fallthru
        _
    $region6: #{tpu_custom_call.1} parent=1 // loop_footer
      %s14 = sadd.s32 1, %s10
    $region7: #{tpu_custom_call.1} parent=1 // loop_footer_branch
      %9 = sbr.rel target = $region3
    $region8: #{tpu_custom_call.1} parent=1 // loop_exit
      _
    %322 = vsyncpa [#allocation4], 1
    %s323 = scalar_lea.sflag [#allocation4], 1
    %324 = vsyncpa %s323, 1

</llo_original>
